<compile_context>
chip_gen: v7x
topology: tpu7x:2x2x1
jax: 0.10.0
libtpu: 0.0.40
codegen_flags: <defaults>
</compile_context>

<pallas_src>
import functools

import jax
import jax.numpy as jnp
from jax.experimental import pallas as pl
from jax.experimental.pallas import tpu as pltpu

_LANE_CANDIDATES = (4096, 2048, 1024, 512, 256, 128)  # wide lanes -> unmasked vst
_TARGET_BLOCK_BYTES = 4 << 20  # ~4 MiB per input tile (x2 for output, x2 buffers)


def _poly_act_kernel(alpha_ref, x_ref, o_ref, *, compute_dtype):
    # alpha_ref: SMEM (1,) f32 scalar parameter
    # x_ref / o_ref: VMEM (block_rows, cols) tiles in the I/O dtype
    alpha = alpha_ref[0].astype(compute_dtype)
    half = jnp.asarray(0.5, dtype=compute_dtype)
    half_alpha = half * alpha  # scalar pre-multiply, hoisted out of the vector chain
    x = x_ref[...].astype(compute_dtype)
    # sigmoid(alpha*x) == 0.5*tanh(0.5*alpha*x) + 0.5  -> 2 EUP tanh, no exp/recip
    out = half * jnp.tanh(half_alpha * x) + half + alpha * jnp.tanh(x)
    o_ref[...] = out.astype(o_ref.dtype)


def _choose_layout(n: int):
    """Pick (cols, rows, pad) for a lane-dense 2-D slab; pad only if needed."""
    # Exact fit, widest lanes first. Row count need NOT be a multiple of 8:
    # the (8,128) rule applies to the block shape, and the ragged last row
    # block is masked by Pallas.
    for cols in _LANE_CANDIDATES:
        if n % cols == 0:
            return cols, n // cols, 0
    # Cheap fallback: round the flat length up to a multiple of 128 lanes only.
    n_pad = pl.cdiv(n, 128) * 128
    for cols in _LANE_CANDIDATES:
        if n_pad % cols == 0:
            return cols, n_pad // cols, n_pad - n
    return 128, n_pad // 128, n_pad - n  # unreachable: n_pad % 128 == 0


def polymorphic_activation(x: jax.Array, alpha: jax.Array) -> jax.Array:
    """Applies sigmoid(alpha*x) + alpha*tanh(x) elementwise via a Pallas kernel.

    x: any shape, floating dtype. alpha: shape (1,) learnable scalar.
    """
    orig_shape = x.shape
    io_dtype = x.dtype
    xf = x.reshape(-1)  # contiguous reshape, no copy
    n = xf.shape[0]

    cols, rows, pad = _choose_layout(n)
    if pad != 0:
        xf = jnp.concatenate([xf, jnp.zeros((pad,), io_dtype)])
    x2d = xf.reshape(rows, cols)

    itemsize = jnp.dtype(io_dtype).itemsize
    # Sublane packing multiple: 8 for 4-byte, 16 for bf16/fp16, 32 for int8/fp8.
    sublane = max(8, 32 // itemsize)

    if rows <= sublane:
        block_rows = rows  # tiny input: single full-extent block
    else:
        target_rows = max(
            sublane,
            (_TARGET_BLOCK_BYTES // (cols * itemsize)) // sublane * sublane,
        )
        max_rows = (rows // sublane) * sublane  # largest aligned block <= rows
        block_rows = min(target_rows, max_rows)
        if block_rows >= rows and rows >= 2 * sublane:
            # Split into (at least) 2 grid steps so both v7x TensorCores get work.
            block_rows = max(sublane, pl.cdiv(pl.cdiv(rows, 2), sublane) * sublane)

    grid = (pl.cdiv(rows, block_rows),)

    # Native bf16 compute on bf16 I/O (v6e/v7x bf16 VPU/EUP); f32 otherwise.
    compute_dtype = jnp.bfloat16 if jnp.dtype(io_dtype) == jnp.dtype(jnp.bfloat16) else jnp.float32

    # Explicit VMEM budget: 2 double-buffered tiles each for input and output,
    # plus generous headroom, portable across the 16/32/32 MiB scoped defaults.
    block_bytes = block_rows * cols * itemsize
    vmem_limit = int(min(max(16 << 20, 6 * block_bytes + (4 << 20)), 56 << 20))

    out2d = pl.pallas_call(
        functools.partial(_poly_act_kernel, compute_dtype=compute_dtype),
        out_shape=jax.ShapeDtypeStruct((rows, cols), io_dtype),
        grid_spec=pl.GridSpec(
            grid=grid,
            in_specs=[
                pl.BlockSpec(memory_space=pltpu.MemorySpace.SMEM),  # alpha scalar
                pl.BlockSpec((block_rows, cols), lambda i: (i, 0)),
            ],
            out_specs=pl.BlockSpec((block_rows, cols), lambda i: (i, 0)),
        ),
        compiler_params=pltpu.CompilerParams(
            dimension_semantics=("parallel",),
            vmem_limit_bytes=vmem_limit,
        ),
    )(alpha.astype(jnp.float32), x2d)

    out_flat = out2d.reshape(-1)
    if pad != 0:
        out_flat = out_flat[:n]
    return out_flat.reshape(orig_shape)


if __name__ == "__main__":
    key = jax.random.PRNGKey(0)

    # Deterministic parameter init, matching nn.Parameter(torch.tensor([0.5])).
    initial_alpha = 0.5
    alpha = jnp.array([initial_alpha], dtype=jnp.float32)

    def ref_fn(x):
        xf = x.astype(jnp.float32)
        return jax.nn.sigmoid(alpha[0] * xf) + alpha[0] * jnp.tanh(xf)

    # 1) Main small NCHW-style input (exact-fit fast path, single block).
    x = jax.random.normal(key, (2, 4, 16, 16), dtype=jnp.float32)
    out = jax.block_until_ready(polymorphic_activation(x, alpha))
    assert out.shape == x.shape and out.dtype == x.dtype
    assert jnp.max(jnp.abs(out - ref_fn(x))) < 1e-5

    # 2) Awkward size exercising the (cheap, 128-lane) pad fallback path,
    #    matching the torch docstring example randn(5).
    x_small = jax.random.normal(jax.random.PRNGKey(1), (5,), dtype=jnp.float32)
    out_small = jax.block_until_ready(polymorphic_activation(x_small, alpha))
    assert out_small.shape == x_small.shape
    assert jnp.max(jnp.abs(out_small - ref_fn(x_small))) < 1e-5

    # 3) Medium input: exercises the grid >= 2 split (both v7x TCs get work).
    x_med = jax.random.normal(jax.random.PRNGKey(2), (8, 128, 128), dtype=jnp.float32)
    out_med = jax.block_until_ready(polymorphic_activation(x_med, alpha))
    assert out_med.shape == x_med.shape
    assert jnp.max(jnp.abs(out_med - ref_fn(x_med))) < 1e-5

    # 4) Ragged row count: exercises the masked last row-block (no padding).
    x_rag = jax.random.normal(jax.random.PRNGKey(3), (9, 4096), dtype=jnp.float32)
    out_rag = jax.block_until_ready(polymorphic_activation(x_rag, alpha))
    assert out_rag.shape == x_rag.shape
    assert jnp.max(jnp.abs(out_rag - ref_fn(x_rag))) < 1e-5

    # 5) bf16 I/O: native bf16 compute path (looser tolerance vs f32 reference).
    x_bf = jax.random.normal(jax.random.PRNGKey(4), (256, 512), dtype=jnp.bfloat16)
    out_bf = jax.block_until_ready(polymorphic_activation(x_bf, alpha))
    assert out_bf.shape == x_bf.shape and out_bf.dtype == jnp.bfloat16
    assert jnp.max(jnp.abs(out_bf.astype(jnp.float32) - ref_fn(x_bf))) < 6e-2

    print("KERNEL_OK")
</pallas_src>

<mosaic_0001>
module attributes {stable_mosaic.version = 11 : i64} {
  func.func @_poly_act_kernel(%arg0: i32, %arg1: memref<1xf32, #tpu.memory_space<smem>>, %arg2: memref<1x2048xf32, #tpu.memory_space<vmem>>, %arg3: memref<1x2048xf32, #tpu.memory_space<vmem>>) attributes {dimension_semantics = [#tpu.dimension_semantics<parallel>], iteration_bounds = array<i64: 1>, scalar_prefetch = 0 : i64, scratch_operands = 0 : i64, tpu.core_type = #tpu.core_type<tc>, window_params = [{transform_indices = @transform_0, window_bounds = array<i64: 1>}, {transform_indices = @transform_1, window_bounds = array<i64: 1, 2048>}, {transform_indices = @transform_2, window_bounds = array<i64: 1, 2048>}]} {
    %c0 = arith.constant 0 : index
    %0 = memref.load %arg1[%c0] : memref<1xf32, #tpu.memory_space<smem>>
    %cst = arith.constant 5.000000e-01 : f32
    %1 = arith.mulf %cst, %0 : f32
    %c0_0 = arith.constant 0 : index
    %c0_1 = arith.constant 0 : index
    %2 = vector.load %arg2[%c0_0, %c0_1] : memref<1x2048xf32, #tpu.memory_space<vmem>>, vector<1x2048xf32>
    %3 = vector.broadcast %1 : f32 to vector<1x2048xf32>
    %4 = arith.mulf %3, %2 : vector<1x2048xf32>
    %5 = math.tanh %4 : vector<1x2048xf32>
    %cst_2 = arith.constant 5.000000e-01 : f32
    %6 = vector.broadcast %cst_2 : f32 to vector<1x2048xf32>
    %7 = arith.mulf %6, %5 : vector<1x2048xf32>
    %cst_3 = arith.constant 5.000000e-01 : f32
    %8 = vector.broadcast %cst_3 : f32 to vector<1x2048xf32>
    %9 = arith.addf %7, %8 : vector<1x2048xf32>
    %10 = math.tanh %2 : vector<1x2048xf32>
    %11 = vector.broadcast %0 : f32 to vector<1x2048xf32>
    %12 = arith.mulf %11, %10 : vector<1x2048xf32>
    %13 = arith.addf %9, %12 : vector<1x2048xf32>
    %c0_4 = arith.constant 0 : index
    %c0_5 = arith.constant 0 : index
    %14 = vector.load %arg3[%c0_4, %c0_5] : memref<1x2048xf32, #tpu.memory_space<vmem>>, vector<1x2048xf32>
    tpu.vector_store %arg3[%c0_4, %c0_5], %13 {strides = array<i32>} : memref<1x2048xf32, #tpu.memory_space<vmem>>, vector<1x2048xf32>,
    return
  }
  func.func @transform_0(%arg0: i32) -> i32 {
    %c0_i32 = arith.constant 0 : i32
    %c0_i32_0 = arith.constant 0 : i32
    return %c0_i32 : i32
  }
  func.func @transform_1(%arg0: i32) -> (i32, i32) {
    %c0_i32 = arith.constant 0 : i32
    %c0_i32_0 = arith.constant 0 : i32
    return %arg0, %c0_i32 : i32, i32
  }
  func.func @transform_2(%arg0: i32) -> (i32, i32) {
    %c0_i32 = arith.constant 0 : i32
    %c0_i32_0 = arith.constant 0 : i32
    return %arg0, %c0_i32 : i32, i32
  }
}

</mosaic_0001>

<llo_original>
// kernel: tpu_custom_call.1
$region0: #{tpu_custom_call.1}
  #allocation0 [shape = 'u32[]', space=smem, size = 0x4, offset = 0x4, fixed_abs, tag = 'smem constant byte address 0x4 - core index']
  #allocation1 [shape = 'u32[144,128]{1,0:T(1,128)}', space=vmem, size = 0x12000, scoped, tag = 'internal scratch']
  #allocation2 [shape = 'f32[1]{0:T(128)S(6)}', space=smem, size = 0x200, scoped, tag = 'scoped memory for tpu_custom_call.1']
  %s0 = inlined_call_operand.<no memory space> [shape: f32[1], index: 0, kind: input, shape index: {}]
  %s1 = inlined_call_operand.hbm [shape: f32[1,2048], index: 1, kind: input, shape index: {}]
  %s2 = inlined_call_operand.hbm [shape: f32[1,2048], index: 2, kind: output, shape index: {}]
  %s3 = sld [smem:[#allocation0]]
  $region22: #{tpu_custom_call.1} parent=0
    _
  %s5 = ssub.s32 1, %s3
  %s6 = scalar_select 0, %s5, %s3
  %7 = sst [smem:[#allocation2]] %s0
  $region1: #{tpu_custom_call.1} parent=0
    #allocation3 [shape = 'u8[8192]{0}', space=vmem, size = 0x2000, scoped, tag = 'input window, operand 1, single buffered']
    #allocation4 [shape = 's32[1]{0}', space=sflag, size = 0x4, scoped, tag = 'scoped memory for tpu_custom_call.1']
    #allocation5 [shape = 's32[1]{0}', space=sflag, size = 0x4, scoped, tag = 'scoped memory for tpu_custom_call.1']
    #allocation6 [shape = 'u8[8192]{0}', space=vmem, size = 0x2000, scoped, tag = 'output window, operand 0, single buffered']
    %8 = vsyncpa [#allocation4], 0
    %9 = vsyncpa [#allocation5], 0
    // Predicated region
    $region2: #{tpu_custom_call.1} parent=1 // pred_check
      _
    $region3: #{tpu_custom_call.1} parent=1 // pred_check_branch
      %11 = sbr.rel (0) target = $region5
    $region4: #{tpu_custom_call.1} parent=1 // pred_region
      _
    $region5: #{tpu_custom_call.1} parent=1 // pred_fallthru
      _
    // Predicated region
    $region6: #{tpu_custom_call.1} parent=1 // pred_check
      _
    $region7: #{tpu_custom_call.1} parent=1 // pred_check_branch
      %13 = sbr.rel (0) target = $region9
    $region8: #{tpu_custom_call.1} parent=1 // pred_region
      %s15 = ssub.s32 256, 256
      %16 = vsyncadd [#allocation4], %s15
      %s18 = sshll.u32 [#allocation3], 4
      %s19 = int_to_ptr.vmem [resolvable:$true] %s18
      %21 = dma.hbm_to_vmem [thread:$0]  %s1, 256, %s19, [#allocation4]
    $region9: #{tpu_custom_call.1} parent=1 // pred_fallthru
      _
    // Predicated region
    $region10: #{tpu_custom_call.1} parent=1 // pred_check
      _
    $region11: #{tpu_custom_call.1} parent=1 // pred_check_branch
      %23 = sbr.rel (0) target = $region13
    $region12: #{tpu_custom_call.1} parent=1 // pred_region
      %24 = dma.done [#allocation4], 256
    $region13: #{tpu_custom_call.1} parent=1 // pred_fallthru
      _
    %s25 = sld [smem:[#allocation2]]
    %s26 = smul.f32 %s25, 0.5
    %v27 = vld [vmem:[#allocation3] sm:$0xff]
    %v28 = vld [vmem:[#allocation3 + $0x8] sm:$0xff]
    %v29 = vstv %s26
    %v30 = vmul.f32 %v29, %v27
    %v31 = vmul.f32 %v29, %v28
    %v32 = vtanh.pop %v30
    %v33 = vtanh.pop %v31
    %v34 = vmul.f32 %v32, 0.5
    %v35 = vmul.f32 %v33, 0.5
    %v36 = vadd.f32 %v34, 0.5
    %v37 = vadd.f32 %v35, 0.5
    %v38 = vtanh.pop %v27
    %v39 = vtanh.pop %v28
    %v40 = vstv %s25
    %v41 = vmul.f32 %v40, %v38
    %v42 = vmul.f32 %v40, %v39
    %v43 = vadd.f32 %v36, %v41
    %v44 = vadd.f32 %v37, %v42
    %45 = vst [vmem:[#allocation6] sm:$0xff] %v43
    %46 = vst [vmem:[#allocation6 + $0x8] sm:$0xff] %v44
    // Predicated region
    $region14: #{tpu_custom_call.1} parent=1 // pred_check
      _
    $region15: #{tpu_custom_call.1} parent=1 // pred_check_branch
      %48 = sbr.rel (0) target = $region17
    $region16: #{tpu_custom_call.1} parent=1 // pred_region
      %s50 = ssub.s32 256, 256
      %51 = vsyncadd [#allocation5], %s50
      %s53 = sshll.u32 [#allocation6], 4
      %s54 = int_to_ptr.vmem [resolvable:$true] %s53
      %56 = dma.vmem_to_hbm [thread:$0]  %s54, 256, %s2, [#allocation5]
    $region17: #{tpu_custom_call.1} parent=1 // pred_fallthru
      _
    // Predicated region
    $region18: #{tpu_custom_call.1} parent=1 // pred_check
      _
    $region19: #{tpu_custom_call.1} parent=1 // pred_check_branch
      %58 = sbr.rel (0) target = $region21
    $region20: #{tpu_custom_call.1} parent=1 // pred_region
      %59 = dma.done [#allocation5], 256
    $region21: #{tpu_custom_call.1} parent=1 // pred_fallthru
      _
    %60 = vsyncpa [#allocation4], 1
    %61 = vsyncpa [#allocation5], 1

</llo_original>
